<compile_context>
chip_gen: v6e
topology: v6e:2x2x1
jax: 0.10.0
libtpu: 0.0.40
codegen_flags: <defaults>
</compile_context>

<pallas_src>
import numpy as np
import jax
import jax.numpy as jnp
from jax.experimental import pallas as pl
from jax.experimental.pallas import tpu as pltpu


def _snap_trig(angle_deg):
    """(cos, sin) for an angle in degrees; exact {0, +-1} for 90-deg multiples."""
    a = float(angle_deg) % 360.0
    table = {0.0: (1.0, 0.0), 90.0: (0.0, 1.0),
             180.0: (-1.0, 0.0), 270.0: (0.0, -1.0)}
    if a in table:
        return table[a]
    rad = np.radians(a)
    return float(np.cos(rad)), float(np.sin(rad))


class RotatorPallas:
    """Pallas implementation of Rotator with data_type='fft'."""

    def __init__(self, rot_angle=(0, 90, 180, 270), data_type="fft",
                 dft_dtype=jnp.float32):
        if data_type != "fft":
            raise NotImplementedError(
                "Only the 'fft' data_type path is implemented in Pallas.")
        self.rot_angle = tuple(rot_angle)
        self.rot_num = len(self.rot_angle)
        self.data_type = data_type
        # f32 default preserves PyTorch numerics; bf16 halves weight VMEM/DMA
        # and uses the bf16 MXU on v6e/v7x (accumulation stays f32).
        self.dft_dtype = dft_dtype

        # Stateful max_value, mirrors the PyTorch module.  After the first
        # call it is a device scalar; _max_set tracks (host-side, no steady
        # state sync) whether a non-zero max has been captured.
        self.max_value = 0
        self._max_set = False

        self._cos_sin = tuple(_snap_trig(a) for a in self.rot_angle)
        self._w_cache = {}      # L -> fused (2L, 2L) DFT matrix (device)
        self._call_cache = {}   # (N, L) -> compiled pallas callable

    # ------------------------------------------------------------------ #
    # tiling / compiler params                                           #
    # ------------------------------------------------------------------ #
    def _pick_tile(self, N, L, R):
        # Keep the double-buffered (input + output) tile footprint around
        # 8 MiB so the pipeline fits comfortably in scoped VMEM on every
        # generation (v7x has only 64 MiB physical VMEM per TC).
        per_row = (R + 1) * 2 * L * 4 * 2          # x row + R out rows, 2 bufs
        cap_rows = max(8, (8 << 20) // max(per_row, 1))
        cap_rows = max(8, min(512, (cap_rows // 8) * 8))
        if N <= cap_rows:
            return N                                # single tile (full dim OK)
        for t in range(cap_rows, 7, -8):            # multiple-of-8 divisor
            if N % t == 0:
                return t
        return N                                    # fallback: one big tile

    def _compiler_params(self, N, L, TN, R):
        it = jnp.dtype(self.dft_dtype).itemsize
        w_bytes = (2 * L) * (2 * L) * it
        x_blk = TN * 2 * L * it
        out_blk = R * TN * 2 * L * 4
        inter = 6 * TN * 2 * L * 4                  # y, p, q, negations, slices
        need = 2 * w_bytes + 2 * x_blk + 2 * out_blk + inter + (1 << 16)

        vmem_limit = None
        if need > (10 << 20):                       # below every gen's default
            try:
                cap_total = int(pltpu.get_tpu_info().vmem_capacity_bytes)
            except Exception:
                cap_total = 64 << 20                # conservative (v7x)
            cap = min(cap_total - (8 << 20), 100 << 20)   # leave scratch room
            vmem_limit = int(min(max(need * 3 // 2, 16 << 20), cap))

        return pltpu.CompilerParams(
            dimension_semantics=("parallel",),      # shard N tiles across TCs
            vmem_limit_bytes=vmem_limit,
        )

    # ------------------------------------------------------------------ #
    # weights / kernel construction                                      #
    # ------------------------------------------------------------------ #
    def _get_weights(self, L):
        key = (L, jnp.dtype(self.dft_dtype).name)
        if key not in self._w_cache:
            #   Re(FFT(x0 + i x1)) =  x0 @ C + x1 @ S
            #   Im(FFT(x0 + i x1)) = -x0 @ S + x1 @ C
            # fused:  [x0 | x1] @ [[C, -S], [S, C]]  ->  [Re | Im]
            k = np.arange(L)
            ang = 2.0 * np.pi * np.outer(k, k) / L
            C = np.cos(ang)
            S = np.sin(ang)
            W = np.block([[C, -S], [S, C]])
            np_dtype = np.dtype(jnp.dtype(self.dft_dtype).name)
            self._w_cache[key] = jnp.asarray(W.astype(np_dtype))
        return self._w_cache[key]

    def _build_call(self, N, L):
        R = self.rot_num
        cos_sin = self._cos_sin
        TN = self._pick_tile(N, L, R)
        if N % TN != 0:
            TN = N
        n_tiles = N // TN
        w_itemsize = jnp.dtype(self.dft_dtype).itemsize

        def kernel(prev_ref, x_ref, w_ref, out_ref):
            # prev_ref : (1, 1)       SMEM  stored max (0.0 == "unset")
            # x_ref    : (TN, 2L)     VMEM  rows = [x_real | x_imag]
            # w_ref    : (2L, 2L)     VMEM  fused DFT matrix [[C,-S],[S,C]]
            # out_ref  : (R, TN, 2L)  VMEM  rows = [Re | Im] per rotation
            prev = prev_ref[0, 0]
            denom = jnp.where(jnp.logical_or(prev == 0.0, prev == 1.0),
                              jnp.float32(1.0), prev)
            inv = 1.0 / denom                       # scalar, hoisted

            # Single MXU matmul for the whole complex DFT of this tile.
            y = jnp.dot(x_ref[...], w_ref[...],
                        preferred_element_type=jnp.float32)   # (TN, 2L) f32
            p = y[:, :L] * inv                      # normalized Re(FFT)
            q = y[:, L:] * inv                      # normalized Im(FFT)

            neg = {}                                # lazily-built negations

            def mneg(v, key):
                if key not in neg:
                    neg[key] = -v
                return neg[key]

            # Rotation by e^{i*theta} commutes with both the DFT and the
            # scalar normalization; 90-degree multiples are trace-time
            # specialized to sign flips / re-im swaps.
            for r, (c, s) in enumerate(cos_sin):
                if (c, s) == (1.0, 0.0):            # 0 deg
                    zre, zim = p, q
                elif (c, s) == (0.0, 1.0):          # 90 deg
                    zre, zim = mneg(q, "q"), p
                elif (c, s) == (-1.0, 0.0):         # 180 deg
                    zre, zim = mneg(p, "p"), mneg(q, "q")
                elif (c, s) == (0.0, -1.0):         # 270 deg
                    zre, zim = q, mneg(p, "p")
                else:                               # generic angle
                    zre = c * p - s * q
                    zim = s * p + c * q
                out_ref[r, :, :L] = zre
                out_ref[r, :, L:] = zim

        call = pl.pallas_call(
            kernel,
            out_shape=jax.ShapeDtypeStruct((R, N, 2 * L), jnp.float32),
            grid=(n_tiles,),
            in_specs=[
                pl.BlockSpec(memory_space=pltpu.MemorySpace.SMEM),   # prev max
                pl.BlockSpec((TN, 2 * L), lambda i: (i, 0)),         # x tile
                pl.BlockSpec((2 * L, 2 * L), lambda i: (0, 0)),      # W resident
            ],
            out_specs=pl.BlockSpec((R, TN, 2 * L), lambda i: (0, i, 0)),
            compiler_params=self._compiler_params(N, L, TN, R),
            cost_estimate=pl.CostEstimate(
                flops=2 * N * (2 * L) * (2 * L) + 8 * R * N * L,
                transcendentals=0,
                bytes_accessed=(N * 2 * L * w_itemsize
                                + (2 * L) * (2 * L) * w_itemsize
                                + R * N * 2 * L * 4 + 8),
            ),
        )
        return call

    # ------------------------------------------------------------------ #
    # forward                                                            #
    # ------------------------------------------------------------------ #
    def __call__(self, x):
        # x: (N, 2, L) -- PyTorch convention (I/Q channels).
        x = jnp.asarray(x)
        N, C, L = x.shape
        assert C == 2, "expected x of shape (N, 2, L)"
        R = self.rot_num

        key = (N, L)
        if key not in self._call_cache:
            self._call_cache[key] = self._build_call(N, L)
        call = self._call_cache[key]
        W = self._get_weights(L)

        # Free, contiguous reshape: row n = [x_real[n] | x_imag[n]].
        x2 = x.reshape(N, 2 * L).astype(self.dft_dtype)
        prev = jnp.asarray(self.max_value, jnp.float32).reshape(1, 1)

        # Fused kernel: DFT + all rotations (+ normalization when a max is
        # already stored; with prev == 0 the output is un-normalized).
        out = call(prev, x2, W)                     # (R, N, 2L) f32

        if not self._max_set:
            # First-call path (torch: `if self.max_value == 0`): capture the
            # global max of the un-normalized x_rot and normalize once here.
            # One-time extra elementwise pass; steady state is fully fused.
            mv = jnp.max(out)
            d = jnp.where(jnp.logical_or(mv == 0.0, mv == 1.0),
                          jnp.float32(1.0), mv)
            out = out / d
            self.max_value = mv                     # stays on device
            # If the captured max is exactly 0 the module recomputes it next
            # call; one scalar host read, first call(s) only.
            self._max_set = bool(mv != 0.0)

        # Free reshape to the PyTorch output layout (torch.cat over dim=0).
        x_rot = out.reshape(R * N, 2, L)
        y_rot = jnp.repeat(jnp.arange(R, dtype=jnp.int32), N)   # [0]*N+[1]*N+...
        y_ins = jnp.arange(N, dtype=jnp.int32)
        return x_rot, y_rot, y_ins, R, N


if __name__ == "__main__":
    # Small shapes consistent with the module: N signals, 2 channels (I/Q),
    # L samples (L % 128 == 0 keeps every store lane-dense).
    N, L = 8, 128
    rot_angle = (0, 90, 180, 270)

    key = jax.random.PRNGKey(0)
    x = jax.random.normal(key, (N, 2, L), dtype=jnp.float32)

    rotator = RotatorPallas(rot_angle=rot_angle, data_type="fft")
    x_rot, y_rot, y_ins, rot_num, x_len = rotator(x)
    jax.block_until_ready(x_rot)
    jax.block_until_ready(rotator.max_value)

    assert x_rot.shape == (rot_num * N, 2, L)
    assert y_rot.shape == (rot_num * N,)
    assert y_ins.shape == (N,)
    assert bool(jnp.all(jnp.isfinite(x_rot)))

    # Reference (mirrors the PyTorch module: rotate, fft, stack, cat, max-norm).
    ref_rows = []
    for ang in rot_angle:
        rad = np.radians(ang)
        c, s = float(np.cos(rad)), float(np.sin(rad))
        zr = (c * x[:, 0, :] - s * x[:, 1, :]) + 1j * (s * x[:, 0, :] + c * x[:, 1, :])
        y = jnp.fft.fft(zr)
        ref_rows.append(jnp.stack([y.real, y.imag], axis=1))
    ref = jnp.concatenate(ref_rows, axis=0)
    m = ref.max()
    ref = ref / jnp.where(jnp.logical_or(m == 0.0, m == 1.0), 1.0, m)
    assert np.allclose(np.asarray(x_rot), np.asarray(ref), rtol=2e-3, atol=2e-3)

    # Second call exercises the stored-max (fully fused, steady-state) path;
    # same input and the same stored denominator must reproduce the output.
    x_rot2, *_ = rotator(x)
    jax.block_until_ready(x_rot2)
    assert np.allclose(np.asarray(x_rot2), np.asarray(x_rot),
                       rtol=1e-5, atol=1e-5)

    print("KERNEL_OK")
</pallas_src>

<mosaic_0001>
module attributes {stable_mosaic.version = 11 : i64} {
  func.func @kernel(%arg0: i32, %arg1: memref<1x1xf32, #tpu.memory_space<smem>>, %arg2: memref<8x256xf32, #tpu.memory_space<vmem>>, %arg3: memref<256x256xf32, #tpu.memory_space<vmem>>, %arg4: memref<4x8x256xf32, #tpu.memory_space<vmem>>) attributes {dimension_semantics = [#tpu.dimension_semantics<parallel>], iteration_bounds = array<i64: 1>, scalar_prefetch = 0 : i64, scratch_operands = 0 : i64, tpu.core_type = #tpu.core_type<tc>, window_params = [{transform_indices = @transform_0, window_bounds = array<i64: 1, 1>}, {transform_indices = @transform_1, window_bounds = array<i64: 8, 256>}, {pipeline_mode = #tpu.pipeline_mode<synchronous>, transform_indices = @transform_2, window_bounds = array<i64: 256, 256>}, {transform_indices = @transform_3, window_bounds = array<i64: 4, 8, 256>}]} {
    %c0 = arith.constant 0 : index
    %c0_0 = arith.constant 0 : index
    %0 = memref.load %arg1[%c0, %c0_0] : memref<1x1xf32, #tpu.memory_space<smem>>
    %cst = arith.constant 0.000000e+00 : f32
    %1 = arith.cmpf oeq, %0, %cst : f32
    %cst_1 = arith.constant 1.000000e+00 : f32
    %2 = arith.cmpf oeq, %0, %cst_1 : f32
    %3 = arith.ori %1, %2 : i1
    %cst_2 = arith.constant 1.000000e+00 : f32
    %4 = arith.select %3, %cst_2, %0 : f32
    %cst_3 = arith.constant 1.000000e+00 : f32
    %5 = arith.divf %cst_3, %4 : f32
    %c0_4 = arith.constant 0 : index
    %c0_5 = arith.constant 0 : index
    %6 = vector.load %arg2[%c0_4, %c0_5] : memref<8x256xf32, #tpu.memory_space<vmem>>, vector<8x256xf32>
    %c0_6 = arith.constant 0 : index
    %c0_7 = arith.constant 0 : index
    %7 = vector.load %arg3[%c0_6, %c0_7] : memref<256x256xf32, #tpu.memory_space<vmem>>, vector<256x256xf32>
    %cst_8 = arith.constant dense<0.000000e+00> : vector<8x256xf32>
    %8 = tpu.matmul %6, %7, %cst_8 {dimension_numbers = #tpu.dot_dimension_numbers<[1], [0], [0], [1], [0, 0, 1, 1], [], []>} : vector<8x256xf32>, vector<256x256xf32>, vector<8x256xf32> -> vector<8x256xf32>
    %9 = vector.extract_strided_slice %8 {offsets = [0, 0], sizes = [8, 128], strides = [1, 1]} : vector<8x256xf32> to vector<8x128xf32>
    %10 = vector.broadcast %5 : f32 to vector<8x128xf32>
    %11 = arith.mulf %9, %10 : vector<8x128xf32>
    %12 = vector.extract_strided_slice %8 {offsets = [0, 128], sizes = [8, 128], strides = [1, 1]} : vector<8x256xf32> to vector<8x128xf32>
    %13 = vector.broadcast %5 : f32 to vector<8x128xf32>
    %14 = arith.mulf %12, %13 : vector<8x128xf32>
    %c0_9 = arith.constant 0 : index
    %c0_10 = arith.constant 0 : index
    %c0_11 = arith.constant 0 : index
    %15 = vector.load %arg4[%c0_9, %c0_10, %c0_11] : memref<4x8x256xf32, #tpu.memory_space<vmem>>, vector<1x8x128xf32>
    %16 = vector.shape_cast %15 : vector<1x8x128xf32> to vector<8x128xf32>
    %17 = vector.shape_cast %11 : vector<8x128xf32> to vector<1x8x128xf32>
    tpu.vector_store %arg4[%c0_9, %c0_10, %c0_11], %17 {strides = array<i32>} : memref<4x8x256xf32, #tpu.memory_space<vmem>>, vector<1x8x128xf32>,
    %c0_12 = arith.constant 0 : index
    %c0_13 = arith.constant 0 : index
    %c128 = arith.constant 128 : index
    %18 = vector.load %arg4[%c0_12, %c0_13, %c128] : memref<4x8x256xf32, #tpu.memory_space<vmem>>, vector<1x8x128xf32>
    %19 = vector.shape_cast %18 : vector<1x8x128xf32> to vector<8x128xf32>
    %20 = vector.shape_cast %14 : vector<8x128xf32> to vector<1x8x128xf32>
    tpu.vector_store %arg4[%c0_12, %c0_13, %c128], %20 {strides = array<i32>} : memref<4x8x256xf32, #tpu.memory_space<vmem>>, vector<1x8x128xf32>,
    %cst_14 = arith.constant 0.000000e+00 : f32
    %21 = vector.broadcast %cst_14 : f32 to vector<8x128xf32>
    %22 = arith.subf %21, %14 : vector<8x128xf32>
    %c1 = arith.constant 1 : index
    %c0_15 = arith.constant 0 : index
    %c0_16 = arith.constant 0 : index
    %23 = vector.load %arg4[%c1, %c0_15, %c0_16] : memref<4x8x256xf32, #tpu.memory_space<vmem>>, vector<1x8x128xf32>
    %24 = vector.shape_cast %23 : vector<1x8x128xf32> to vector<8x128xf32>
    %25 = vector.shape_cast %22 : vector<8x128xf32> to vector<1x8x128xf32>
    tpu.vector_store %arg4[%c1, %c0_15, %c0_16], %25 {strides = array<i32>} : memref<4x8x256xf32, #tpu.memory_space<vmem>>, vector<1x8x128xf32>,
    %c1_17 = arith.constant 1 : index
    %c0_18 = arith.constant 0 : index
    %c128_19 = arith.constant 128 : index
    %26 = vector.load %arg4[%c1_17, %c0_18, %c128_19] : memref<4x8x256xf32, #tpu.memory_space<vmem>>, vector<1x8x128xf32>
    %27 = vector.shape_cast %26 : vector<1x8x128xf32> to vector<8x128xf32>
    %28 = vector.shape_cast %11 : vector<8x128xf32> to vector<1x8x128xf32>
    tpu.vector_store %arg4[%c1_17, %c0_18, %c128_19], %28 {strides = array<i32>} : memref<4x8x256xf32, #tpu.memory_space<vmem>>, vector<1x8x128xf32>,
    %cst_20 = arith.constant 0.000000e+00 : f32
    %29 = vector.broadcast %cst_20 : f32 to vector<8x128xf32>
    %30 = arith.subf %29, %11 : vector<8x128xf32>
    %c2 = arith.constant 2 : index
    %c0_21 = arith.constant 0 : index
    %c0_22 = arith.constant 0 : index
    %31 = vector.load %arg4[%c2, %c0_21, %c0_22] : memref<4x8x256xf32, #tpu.memory_space<vmem>>, vector<1x8x128xf32>
    %32 = vector.shape_cast %31 : vector<1x8x128xf32> to vector<8x128xf32>
    %33 = vector.shape_cast %30 : vector<8x128xf32> to vector<1x8x128xf32>
    tpu.vector_store %arg4[%c2, %c0_21, %c0_22], %33 {strides = array<i32>} : memref<4x8x256xf32, #tpu.memory_space<vmem>>, vector<1x8x128xf32>,
    %c2_23 = arith.constant 2 : index
    %c0_24 = arith.constant 0 : index
    %c128_25 = arith.constant 128 : index
    %34 = vector.load %arg4[%c2_23, %c0_24, %c128_25] : memref<4x8x256xf32, #tpu.memory_space<vmem>>, vector<1x8x128xf32>
    %35 = vector.shape_cast %34 : vector<1x8x128xf32> to vector<8x128xf32>
    %36 = vector.shape_cast %22 : vector<8x128xf32> to vector<1x8x128xf32>
    tpu.vector_store %arg4[%c2_23, %c0_24, %c128_25], %36 {strides = array<i32>} : memref<4x8x256xf32, #tpu.memory_space<vmem>>, vector<1x8x128xf32>,
    %c3 = arith.constant 3 : index
    %c0_26 = arith.constant 0 : index
    %c0_27 = arith.constant 0 : index
    %37 = vector.load %arg4[%c3, %c0_26, %c0_27] : memref<4x8x256xf32, #tpu.memory_space<vmem>>, vector<1x8x128xf32>
    %38 = vector.shape_cast %37 : vector<1x8x128xf32> to vector<8x128xf32>
    %39 = vector.shape_cast %14 : vector<8x128xf32> to vector<1x8x128xf32>
    tpu.vector_store %arg4[%c3, %c0_26, %c0_27], %39 {strides = array<i32>} : memref<4x8x256xf32, #tpu.memory_space<vmem>>, vector<1x8x128xf32>,
    %c3_28 = arith.constant 3 : index
    %c0_29 = arith.constant 0 : index
    %c128_30 = arith.constant 128 : index
    %40 = vector.load %arg4[%c3_28, %c0_29, %c128_30] : memref<4x8x256xf32, #tpu.memory_space<vmem>>, vector<1x8x128xf32>
    %41 = vector.shape_cast %40 : vector<1x8x128xf32> to vector<8x128xf32>
    %42 = vector.shape_cast %30 : vector<8x128xf32> to vector<1x8x128xf32>
    tpu.vector_store %arg4[%c3_28, %c0_29, %c128_30], %42 {strides = array<i32>} : memref<4x8x256xf32, #tpu.memory_space<vmem>>, vector<1x8x128xf32>,
    return
  }
  func.func @transform_0(%arg0: i32) -> (i32, i32) {
    %c0_i32 = arith.constant 0 : i32
    %c0_i32_0 = arith.constant 0 : i32
    %c0_i32_1 = arith.constant 0 : i32
    return %c0_i32, %c0_i32_0 : i32, i32
  }
  func.func @transform_1(%arg0: i32) -> (i32, i32) {
    %c0_i32 = arith.constant 0 : i32
    %c0_i32_0 = arith.constant 0 : i32
    return %arg0, %c0_i32 : i32, i32
  }
  func.func @transform_2(%arg0: i32) -> (i32, i32) {
    %c0_i32 = arith.constant 0 : i32
    %c0_i32_0 = arith.constant 0 : i32
    %c0_i32_1 = arith.constant 0 : i32
    return %c0_i32, %c0_i32_0 : i32, i32
  }
  func.func @transform_3(%arg0: i32) -> (i32, i32, i32) {
    %c0_i32 = arith.constant 0 : i32
    %c0_i32_0 = arith.constant 0 : i32
    %c0_i32_1 = arith.constant 0 : i32
    return %c0_i32, %arg0, %c0_i32_0 : i32, i32, i32
  }
}

</mosaic_0001>

<llo_original>
// kernel: tpu_custom_call.1
$region0: #{tpu_custom_call.1}
  #allocation0 [shape = 'u32[]', space=smem, size = 0x4, offset = 0x4, fixed_abs, tag = 'smem constant byte address 0x4 - core index']
  #allocation1 [shape = 'u32[144,128]{1,0:T(1,128)}', space=vmem, size = 0x12000, scoped, tag = 'internal scratch']
  #allocation2 [shape = 'f32[1,1]{1,0:T(1,128)S(6)}', space=smem, size = 0x200, scoped, tag = 'scoped memory for tpu_custom_call.1']
  %s0 = inlined_call_operand.<no memory space> [shape: f32[1,1], index: 0, kind: input, shape index: {}]
  %s1 = inlined_call_operand.hbm [shape: f32[8,256], index: 1, kind: input, shape index: {}]
  %s2 = inlined_call_operand.hbm [shape: f32[256,256], index: 2, kind: input, shape index: {}]
  %s3 = inlined_call_operand.hbm [shape: f32[4,8,256], index: 3, kind: output, shape index: {}]
  %s4 = sld [smem:[#allocation0]]
  $region30: #{tpu_custom_call.1} parent=0
    _
  %s6 = ssub.s32 1, %s4
  %s7 = scalar_select 0, %s6, %s4
  %8 = sst [smem:[#allocation2]] %s0
  $region1: #{tpu_custom_call.1} parent=0
    #allocation3 [shape = 'u8[8192]{0}', space=vmem, size = 0x2000, scoped, tag = 'input window, operand 1, single buffered']
    #allocation4 [shape = 's32[1]{0}', space=sflag, size = 0x4, scoped, tag = 'scoped memory for tpu_custom_call.1']
    #allocation5 [shape = 's32[1]{0}', space=sflag, size = 0x4, scoped, tag = 'scoped memory for tpu_custom_call.1']
    #allocation6 [shape = 'u8[262144]{0}', space=vmem, size = 0x40000, scoped, tag = 'input window, operand 2, single buffered']
    #allocation7 [shape = 's32[1]{0}', space=sflag, size = 0x4, scoped, tag = 'scoped memory for tpu_custom_call.1']
    #allocation8 [shape = 'u8[32768]{0}', space=vmem, size = 0x8000, scoped, tag = 'output window, operand 0, single buffered']
    %9 = vsyncpa [#allocation4], 0
    %10 = vsyncpa [#allocation7], 0
    %11 = vsyncpa [#allocation5], 0
    // Predicated region
    $region2: #{tpu_custom_call.1} parent=1 // pred_check
      _
    $region3: #{tpu_custom_call.1} parent=1 // pred_check_branch
      %13 = sbr.rel (0) target = $region5
    $region4: #{tpu_custom_call.1} parent=1 // pred_region
      _
    $region5: #{tpu_custom_call.1} parent=1 // pred_fallthru
      _
    // Predicated region
    $region6: #{tpu_custom_call.1} parent=1 // pred_check
      _
    $region7: #{tpu_custom_call.1} parent=1 // pred_check_branch
      %15 = sbr.rel (0) target = $region9
    $region8: #{tpu_custom_call.1} parent=1 // pred_region
      %s17 = ssub.s32 256, 256
      %18 = vsyncadd [#allocation4], %s17
      %s20 = sshll.u32 [#allocation3], 4
      %s21 = int_to_ptr.vmem [resolvable:$true] %s20
      %23 = dma.hbm_to_vmem [thread:$0]  %s1, 256, %s21, [#allocation4]
    $region9: #{tpu_custom_call.1} parent=1 // pred_fallthru
      _
    // Predicated region
    $region10: #{tpu_custom_call.1} parent=1 // pred_check
      _
    $region11: #{tpu_custom_call.1} parent=1 // pred_check_branch
      %25 = sbr.rel (0) target = $region13
    $region12: #{tpu_custom_call.1} parent=1 // pred_region
      %s27 = ssub.s32 8192, 8192
      %28 = vsyncadd [#allocation7], %s27
      %s29 = sshll.u32 [#allocation6], 4
      %s30 = int_to_ptr.vmem [resolvable:$true] %s29
      %35 = dma.hbm_to_vmem [thread:$0]  %s2, 8192, %s30, [#allocation7], 256, 256, 16
    $region13: #{tpu_custom_call.1} parent=1 // pred_fallthru
      _
    // Predicated region
    $region14: #{tpu_custom_call.1} parent=1 // pred_check
      _
    $region15: #{tpu_custom_call.1} parent=1 // pred_check_branch
      %37 = sbr.rel (0) target = $region17
    $region16: #{tpu_custom_call.1} parent=1 // pred_region
      %38 = dma.done [#allocation4], 256
    $region17: #{tpu_custom_call.1} parent=1 // pred_fallthru
      _
    // Predicated region
    $region18: #{tpu_custom_call.1} parent=1 // pred_check
      _
    $region19: #{tpu_custom_call.1} parent=1 // pred_check_branch
      %40 = sbr.rel (0) target = $region21
    $region20: #{tpu_custom_call.1} parent=1 // pred_region
      %41 = dma.done [#allocation7], 8192
    $region21: #{tpu_custom_call.1} parent=1 // pred_fallthru
      _
    %s42 = sld [smem:[#allocation2]]
    %p43 = scmp.eq.f32.partialorder %s42, 0.0
    %p44 = scmp.eq.f32.partialorder %s42, 1.0
    %p45 = por %p43, %p44
    %s46 = scalar_select %p45, 1.0, %s42
    %v47 = vstv %s46
    %v48 = vrcp.pop %v47
    %s49 = vtos %v48
    %v50 = vld [vmem:[#allocation3] sm:$0xff]
    %v51 = vld [vmem:[#allocation3 + $0x8] sm:$0xff]
    %v52 = vld [vmem:[#allocation6] sm:$0xff]
    %v53 = vld [vmem:[#allocation6 + $0x8] sm:$0xff]
    %v54 = vld [vmem:[#allocation6 + $0x10] sm:$0xff]
    %v55 = vld [vmem:[#allocation6 + $0x18] sm:$0xff]
    %v56 = vld [vmem:[#allocation6 + $0x20] sm:$0xff]
    %v57 = vld [vmem:[#allocation6 + $0x28] sm:$0xff]
    %v58 = vld [vmem:[#allocation6 + $0x30] sm:$0xff]
    %v59 = vld [vmem:[#allocation6 + $0x38] sm:$0xff]
    %v60 = vld [vmem:[#allocation6 + $0x40] sm:$0xff]
    %v61 = vld [vmem:[#allocation6 + $0x48] sm:$0xff]
    %v62 = vld [vmem:[#allocation6 + $0x50] sm:$0xff]
    %v63 = vld [vmem:[#allocation6 + $0x58] sm:$0xff]
    %v64 = vld [vmem:[#allocation6 + $0x60] sm:$0xff]
    %v65 = vld [vmem:[#allocation6 + $0x68] sm:$0xff]
    %v66 = vld [vmem:[#allocation6 + $0x70] sm:$0xff]
    %v67 = vld [vmem:[#allocation6 + $0x78] sm:$0xff]
    %v68 = vld [vmem:[#allocation6 + $0x80] sm:$0xff]
    %v69 = vld [vmem:[#allocation6 + $0x88] sm:$0xff]
    %v70 = vld [vmem:[#allocation6 + $0x90] sm:$0xff]
    %v71 = vld [vmem:[#allocation6 + $0x98] sm:$0xff]
    %v72 = vld [vmem:[#allocation6 + $0xa0] sm:$0xff]
    %v73 = vld [vmem:[#allocation6 + $0xa8] sm:$0xff]
    %v74 = vld [vmem:[#allocation6 + $0xb0] sm:$0xff]
    %v75 = vld [vmem:[#allocation6 + $0xb8] sm:$0xff]
    %v76 = vld [vmem:[#allocation6 + $0xc0] sm:$0xff]
    %v77 = vld [vmem:[#allocation6 + $0xc8] sm:$0xff]
    %v78 = vld [vmem:[#allocation6 + $0xd0] sm:$0xff]
    %v79 = vld [vmem:[#allocation6 + $0xd8] sm:$0xff]
    %v80 = vld [vmem:[#allocation6 + $0xe0] sm:$0xff]
    %v81 = vld [vmem:[#allocation6 + $0xe8] sm:$0xff]
    %v82 = vld [vmem:[#allocation6 + $0xf0] sm:$0xff]
    %v83 = vld [vmem:[#allocation6 + $0xf8] sm:$0xff]
    %v84 = vld [vmem:[#allocation6 + $0x100] sm:$0xff]
    %v85 = vld [vmem:[#allocation6 + $0x108] sm:$0xff]
    %v86 = vld [vmem:[#allocation6 + $0x110] sm:$0xff]
    %v87 = vld [vmem:[#allocation6 + $0x118] sm:$0xff]
    %v88 = vld [vmem:[#allocation6 + $0x120] sm:$0xff]
    %v89 = vld [vmem:[#allocation6 + $0x128] sm:$0xff]
    %v90 = vld [vmem:[#allocation6 + $0x130] sm:$0xff]
    %v91 = vld [vmem:[#allocation6 + $0x138] sm:$0xff]
    %v92 = vld [vmem:[#allocation6 + $0x140] sm:$0xff]
    %v93 = vld [vmem:[#allocation6 + $0x148] sm:$0xff]
    %v94 = vld [vmem:[#allocation6 + $0x150] sm:$0xff]
    %v95 = vld [vmem:[#allocation6 + $0x158] sm:$0xff]
    %v96 = vld [vmem:[#allocation6 + $0x160] sm:$0xff]
    %v97 = vld [vmem:[#allocation6 + $0x168] sm:$0xff]
    %v98 = vld [vmem:[#allocation6 + $0x170] sm:$0xff]
    %v99 = vld [vmem:[#allocation6 + $0x178] sm:$0xff]
    %v100 = vld [vmem:[#allocation6 + $0x180] sm:$0xff]
    %v101 = vld [vmem:[#allocation6 + $0x188] sm:$0xff]
    %v102 = vld [vmem:[#allocation6 + $0x190] sm:$0xff]
    %v103 = vld [vmem:[#allocation6 + $0x198] sm:$0xff]
    %v104 = vld [vmem:[#allocation6 + $0x1a0] sm:$0xff]
    %v105 = vld [vmem:[#allocation6 + $0x1a8] sm:$0xff]
    %v106 = vld [vmem:[#allocation6 + $0x1b0] sm:$0xff]
    %v107 = vld [vmem:[#allocation6 + $0x1b8] sm:$0xff]
    %v108 = vld [vmem:[#allocation6 + $0x1c0] sm:$0xff]
    %v109 = vld [vmem:[#allocation6 + $0x1c8] sm:$0xff]
    %v110 = vld [vmem:[#allocation6 + $0x1d0] sm:$0xff]
    %v111 = vld [vmem:[#allocation6 + $0x1d8] sm:$0xff]
    %v112 = vld [vmem:[#allocation6 + $0x1e0] sm:$0xff]
    %v113 = vld [vmem:[#allocation6 + $0x1e8] sm:$0xff]
    %v114 = vld [vmem:[#allocation6 + $0x1f0] sm:$0xff]
    %v115 = vld [vmem:[#allocation6 + $0x1f8] sm:$0xff]
    %116 = vmatprep.subr.mxu0 %v83
    %117 = vmatpush1.msra.mxu0 %v82
    %118 = vmatprep.subr.mxu0 %v81
    %119 = vmatpush1.msra.mxu0 %v80
    %120 = vmatprep.subr.mxu0 %v79
    %121 = vmatpush1.msra.mxu0 %v78
    %122 = vmatprep.subr.mxu0 %v77
    %123 = vmatpush1.msra.mxu0 %v76
    %124 = vmatprep.subr.mxu0 %v75
    %125 = vmatpush1.msra.mxu0 %v74
    %126 = vmatprep.subr.mxu0 %v73
    %127 = vmatpush1.msra.mxu0 %v72
    %128 = vmatprep.subr.mxu0 %v71
    %129 = vmatpush1.msra.mxu0 %v70
    %130 = vmatprep.subr.mxu0 %v69
    %131 = vmatpush1.msra.mxu0 %v68
    %132 = vmatprep.subr.mxu0 %v67
    %133 = vmatpush1.msra.mxu0 %v66
    %134 = vmatprep.subr.mxu0 %v65
    %135 = vmatpush1.msra.mxu0 %v64
    %136 = vmatprep.subr.mxu0 %v63
    %137 = vmatpush1.msra.mxu0 %v62
    %138 = vmatprep.subr.mxu0 %v61
    %139 = vmatpush1.msra.mxu0 %v60
    %140 = vmatprep.subr.mxu0 %v59
    %141 = vmatpush1.msra.mxu0 %v58
    %142 = vmatprep.subr.mxu0 %v57
    %143 = vmatpush1.msra.mxu0 %v56
    %144 = vmatprep.subr.mxu0 %v55
    %145 = vmatpush1.msra.mxu0 %v54
    %146 = vmatprep.subr.mxu0 %v53
    %147 = vmatpush1.msra.mxu0 %v52
    %148 = vmatprep.subr.mxu0 %v115
    %149 = vmatpush2.msra.mxu0 %v114
    %150 = vmatprep.subr.mxu0 %v113
    %151 = vmatpush2.msra.mxu0 %v112
    %152 = vmatprep.subr.mxu0 %v111
    %153 = vmatpush2.msra.mxu0 %v110
    %154 = vmatprep.subr.mxu0 %v109
    %155 = vmatpush2.msra.mxu0 %v108
    %156 = vmatprep.subr.mxu0 %v107
    %157 = vmatpush2.msra.mxu0 %v106
    %158 = vmatprep.subr.mxu0 %v105
    %159 = vmatpush2.msra.mxu0 %v104
    %160 = vmatprep.subr.mxu0 %v103
    %161 = vmatpush2.msra.mxu0 %v102
    %162 = vmatprep.subr.mxu0 %v101
    %163 = vmatpush2.msra.mxu0 %v100
    %164 = vmatprep.subr.mxu0 %v99
    %165 = vmatpush2.msra.mxu0 %v98
    %166 = vmatprep.subr.mxu0 %v97
    %167 = vmatpush2.msra.mxu0 %v96
    %168 = vmatprep.subr.mxu0 %v95
    %169 = vmatpush2.msra.mxu0 %v94
    %170 = vmatprep.subr.mxu0 %v93
    %171 = vmatpush2.msra.mxu0 %v92
    %172 = vmatprep.subr.mxu0 %v91
    %173 = vmatpush2.msra.mxu0 %v90
    %174 = vmatprep.subr.mxu0 %v89
    %175 = vmatpush2.msra.mxu0 %v88
    %176 = vmatprep.subr.mxu0 %v87
    %177 = vmatpush2.msra.mxu0 %v86
    %178 = vmatprep.subr.mxu0 %v85
    %179 = vmatpush2.msra.mxu0 %v84
    %180 = vmatprep.mubr.f32.mxu0 %v51
    %181 = vmatmul.mubr.f32.gmra.mxu0 %v50
    %v182 = vpop.f32.mrf.mxu0
    %v183 = vadd.f32 0.0, %v182
    %v184 = vpop.f32.mrf.mxu0
    %v185 = vadd.f32 0.0, %v184
    %186 = vdwg.mxu0
    %v187 = vstv %s49
    %v188 = vmul.f32 %v183, %v187
    %v189 = vmul.f32 %v185, %v187
    %190 = vst [vmem:[#allocation8] sm:$0xff] %v188
    %191 = vst [vmem:[#allocation8 + $0x8] sm:$0xff] %v189
    %v192 = vsub.f32 0.0, %v189
    %s193 = scalar_lea.vmem [#allocation8], 16
    %194 = vst [vmem:[%s193] sm:$0xff] %v192
    %195 = vst [vmem:[%s193 + $0x8] sm:$0xff] %v188
    %v196 = vsub.f32 0.0, %v188
    %s197 = scalar_lea.vmem [#allocation8], 32
    %198 = vst [vmem:[%s197] sm:$0xff] %v196
    %199 = vst [vmem:[%s197 + $0x8] sm:$0xff] %v192
    %s200 = scalar_lea.vmem [#allocation8], 48
    %201 = vst [vmem:[%s200] sm:$0xff] %v189
    %202 = vst [vmem:[%s200 + $0x8] sm:$0xff] %v196
    // Predicated region
    $region22: #{tpu_custom_call.1} parent=1 // pred_check
      _
    $region23: #{tpu_custom_call.1} parent=1 // pred_check_branch
      %204 = sbr.rel (0) target = $region25
    $region24: #{tpu_custom_call.1} parent=1 // pred_region
      %s206 = ssub.s32 1024, 1024
      %207 = vsyncadd [#allocation5], %s206
      %s208 = sshll.u32 [#allocation8], 4
      %s209 = int_to_ptr.vmem [resolvable:$true] %s208
      %214 = dma.vmem_to_hbm [thread:$0]  %s209, 1024, %s3, [#allocation5], 256, 256, 16
    $region25: #{tpu_custom_call.1} parent=1 // pred_fallthru
      _
    // Predicated region
    $region26: #{tpu_custom_call.1} parent=1 // pred_check
      _
    $region27: #{tpu_custom_call.1} parent=1 // pred_check_branch
      %216 = sbr.rel (0) target = $region29
    $region28: #{tpu_custom_call.1} parent=1 // pred_region
      %217 = dma.done [#allocation5], 1024
    $region29: #{tpu_custom_call.1} parent=1 // pred_fallthru
      _
    %218 = vsyncpa [#allocation4], 1
    %219 = vsyncpa [#allocation7], 1
    %220 = vsyncpa [#allocation5], 1

</llo_original>
